<compile_context>
chip_gen: v7x
topology: tpu7x:2x2x1
jax: 0.10.0
libtpu: 0.0.40
codegen_flags: <defaults>
</compile_context>

<pallas_src>
import functools

import jax
import jax.numpy as jnp
from jax.experimental import pallas as pl
from jax.experimental.pallas import tpu as pltpu


def _mlp_kernel(x_ref, w_in_ref, b_in_ref, w_hid_ref, b_hid_ref,
                w_out_ref, b_out_ref, o_ref, *, n_hidden, in_dim):
    # x_ref: (in_dim, tb) f32   -- batch on the lane axis
    # w_in : (width, in_dim) f32, b_in: (width, 1) f32
    # w_hid: (n_blk, width, width) bf16, b_hid: (n_blk, width, 1) f32
    # w_out: (width, 1) f32, b_out: (1,) f32 in SMEM
    x = x_ref[...]
    w_in = w_in_ref[...]

    # ---- Input layer: K=6 is too degenerate for the MXU -> 6 VPU broadcast
    # multiply-adds (outer-product accumulation), all in f32.
    h = w_in[:, 0:1] * x[0:1, :]
    for k in range(1, in_dim):
        h = h + w_in[:, k:k + 1] * x[k:k + 1, :]
    h = jnp.maximum(h + b_in_ref[...], 0.0)          # (width, tb) f32

    # ---- Hidden layers: bf16-in / f32-accumulate MXU matmuls, no transposes
    # (weights are already in PyTorch (out,in) layout which is exactly what
    # the column-major formulation h_new = W @ h needs).
    # NOTE: depth is small here so a static unroll is fine; for deep nets
    # switch to lax.fori_loop(..., unroll=True) with dynamic w_hid_ref[i].
    for i in range(n_hidden):
        w = w_hid_ref[i]                              # (width, width) bf16
        h = jnp.dot(w, h.astype(jnp.bfloat16),
                    preferred_element_type=jnp.float32)
        h = jnp.maximum(h + b_hid_ref[i], 0.0)        # f32 bias + ReLU

    # ---- Output layer: N=1 -> elementwise multiply + sublane reduction,
    # producing a lane-dense (1, tb) row.
    out = jnp.sum(h * w_out_ref[...], axis=0, keepdims=True)   # (1, tb) f32
    o_ref[...] = (out + b_out_ref[0]).astype(o_ref.dtype)


def _default_batch_tile(B):
    # Prefer ~512-row lane-dense tiles (good overhead/roofline tradeoff and a
    # multi-step grid for v7x's two TensorCores); fall back to any multiple of
    # 128 that divides B, else one tile covering the whole batch.
    for t in (512, 1024, 2048, 256, 128):
        if B % t == 0:
            return t
    return B


def net_relu_forward(x, params, *, batch_tile=None):
    """Forward pass of NetReLU.

    x: (B, 6) float32
    params (PyTorch-native layouts):
      w_in  (width, 6),              b_in  (width,)
      w_hid (depth-1, width, width), b_hid (depth-1, width)
      w_out (1, width),              b_out (1,)
    returns: (B, 1) float32
    """
    x = x.astype(jnp.float32)
    B, in_dim = x.shape
    width = params["w_in"].shape[0]
    n_hidden = params["w_hid"].shape[0]

    tb = _default_batch_tile(B) if batch_tile is None else int(batch_tile)
    B_pad = ((B + tb - 1) // tb) * tb
    assert tb == B_pad or tb % 128 == 0, (
        "batch_tile must be a multiple of 128 (or cover the whole padded batch)")

    # ---- Wrapper-side layout plumbing (all of it lives OUTSIDE the kernel) --
    x_t = x.T                                                   # (in_dim, B)
    if B_pad != B:
        x_t = jnp.pad(x_t, ((0, 0), (0, B_pad - B)))

    w_in = params["w_in"].astype(jnp.float32)                   # (width, in_dim)
    b_in = params["b_in"].reshape(width, 1).astype(jnp.float32)
    if n_hidden > 0:
        w_hid = params["w_hid"].astype(jnp.bfloat16)            # bf16 once, halves DMA
        b_hid = params["b_hid"].reshape(n_hidden, width, 1).astype(jnp.float32)
        n_blk = n_hidden
    else:
        w_hid = jnp.zeros((1, width, width), jnp.bfloat16)      # dummy, never read
        b_hid = jnp.zeros((1, width, 1), jnp.float32)
        n_blk = 1
    w_out = params["w_out"].reshape(width, 1).astype(jnp.float32)
    b_out = params["b_out"].reshape(1).astype(jnp.float32)      # scalar -> SMEM

    # ---- Explicit VMEM budget (v7x has only 64 MiB physical): tiny here, but
    # sized with headroom so scaling width/depth fails loudly, not silently.
    weight_bytes = (w_in.size + b_in.size + b_hid.size + w_out.size) * 4 \
        + w_hid.size * 2
    io_bytes = 2 * (in_dim * tb + tb) * 4          # double-buffered x / out tiles
    act_bytes = width * tb * 4
    vmem_limit = int(min(max(4 * (weight_bytes + io_bytes + act_bytes),
                             16 * 1024 * 1024), 48 * 1024 * 1024))

    kernel = functools.partial(_mlp_kernel, n_hidden=n_hidden, in_dim=in_dim)

    out_row = pl.pallas_call(
        kernel,
        out_shape=jax.ShapeDtypeStruct((1, B_pad), jnp.float32),
        grid_spec=pltpu.PrefetchScalarGridSpec(
            num_scalar_prefetch=0,
            grid=(B_pad // tb,),
            in_specs=[
                # x^T: tiled along lanes (batch)
                pl.BlockSpec((in_dim, tb), lambda i: (0, i)),
                # grid-invariant weights / biases (full blocks)
                pl.BlockSpec((width, in_dim), lambda i: (0, 0)),
                pl.BlockSpec((width, 1), lambda i: (0, 0)),
                pl.BlockSpec((n_blk, width, width), lambda i: (0, 0, 0)),
                pl.BlockSpec((n_blk, width, 1), lambda i: (0, 0, 0)),
                pl.BlockSpec((width, 1), lambda i: (0, 0)),
                # b_out scalar lives in SMEM (no padded VMEM tile)
                pl.BlockSpec(memory_space=pltpu.MemorySpace.SMEM),
            ],
            out_specs=pl.BlockSpec((1, tb), lambda i: (0, i)),
        ),
        compiler_params=pltpu.CompilerParams(
            dimension_semantics=("parallel",),   # grid >= 2 -> both v7x TCs busy
            vmem_limit_bytes=vmem_limit,
        ),
    )(x_t, w_in, b_in, w_hid, b_hid, w_out, b_out)

    out = out_row.reshape(B_pad, 1)              # lane-dense row -> (B_pad, 1)
    return out[:B] if B_pad != B else out


def init_params(key, width, depth):
    """Deterministic init mimicking torch.nn.Linear (uniform +-1/sqrt(fan_in)),
    stored in PyTorch-native shapes."""
    n_hidden = depth - 1
    keys = jax.random.split(key, 6)

    def unif(k, shape, fan_in):
        bound = 1.0 / jnp.sqrt(jnp.float32(fan_in))
        return jax.random.uniform(k, shape, jnp.float32, -bound, bound)

    return {
        "w_in": unif(keys[0], (width, 6), 6),
        "b_in": unif(keys[1], (width,), 6),
        "w_hid": unif(keys[2], (n_hidden, width, width), width),
        "b_hid": unif(keys[3], (n_hidden, width), width),
        "w_out": unif(keys[4], (1, width), width),
        "b_out": unif(keys[5], (1,), width),
    }


def net_relu_ref(x, params):
    """Pure-JAX (f32) reference matching the PyTorch forward semantics."""
    h = jnp.maximum(x @ params["w_in"].T + params["b_in"], 0.0)
    for i in range(params["w_hid"].shape[0]):
        h = jnp.maximum(h @ params["w_hid"][i].T + params["b_hid"][i], 0.0)
    return h @ params["w_out"].T + params["b_out"]


if __name__ == "__main__":
    width, depth = 32, 3          # 2 hidden Linear(width,width) layers
    batch = 256

    key = jax.random.PRNGKey(0)
    k_params, k_x = jax.random.split(key)
    params = init_params(k_params, width, depth)
    x = jax.random.normal(k_x, (batch, 6), jnp.float32)

    ref = net_relu_ref(x, params)

    # Multi-step grid (grid=(2,)) — exercises tiling / parallel semantics.
    out = jax.block_until_ready(net_relu_forward(x, params, batch_tile=128))
    assert out.shape == (batch, 1)
    # bf16-in / f32-acc hidden matmuls -> slightly looser tolerance than pure f32.
    assert jnp.allclose(out, ref, atol=3e-2, rtol=3e-2), \
        float(jnp.max(jnp.abs(out - ref)))

    # Default tile path (single grid step).
    out2 = jax.block_until_ready(net_relu_forward(x, params))
    assert out2.shape == (batch, 1)
    assert jnp.allclose(out2, ref, atol=3e-2, rtol=3e-2), \
        float(jnp.max(jnp.abs(out2 - ref)))

    print("KERNEL_OK")
</pallas_src>

<mosaic_0001>
module attributes {stable_mosaic.version = 11 : i64} {
  func.func @_mlp_kernel(%arg0: i32, %arg1: memref<6x128xf32, #tpu.memory_space<vmem>>, %arg2: memref<32x6xf32, #tpu.memory_space<vmem>>, %arg3: memref<32x1xf32, #tpu.memory_space<vmem>>, %arg4: memref<2x32x32xbf16, #tpu.memory_space<vmem>>, %arg5: memref<2x32x1xf32, #tpu.memory_space<vmem>>, %arg6: memref<32x1xf32, #tpu.memory_space<vmem>>, %arg7: memref<1xf32, #tpu.memory_space<smem>>, %arg8: memref<1x128xf32, #tpu.memory_space<vmem>>) attributes {dimension_semantics = [#tpu.dimension_semantics<parallel>], iteration_bounds = array<i64: 2>, scalar_prefetch = 0 : i64, scratch_operands = 0 : i64, tpu.core_type = #tpu.core_type<tc>, window_params = [{transform_indices = @transform_0, window_bounds = array<i64: 6, 128>}, {pipeline_mode = #tpu.pipeline_mode<synchronous>, transform_indices = @transform_1, window_bounds = array<i64: 32, 6>}, {pipeline_mode = #tpu.pipeline_mode<synchronous>, transform_indices = @transform_2, window_bounds = array<i64: 32, 1>}, {pipeline_mode = #tpu.pipeline_mode<synchronous>, transform_indices = @transform_3, window_bounds = array<i64: 2, 32, 32>}, {pipeline_mode = #tpu.pipeline_mode<synchronous>, transform_indices = @transform_4, window_bounds = array<i64: 2, 32, 1>}, {pipeline_mode = #tpu.pipeline_mode<synchronous>, transform_indices = @transform_5, window_bounds = array<i64: 32, 1>}, {transform_indices = @transform_6, window_bounds = array<i64: 1>}, {transform_indices = @transform_7, window_bounds = array<i64: 1, 128>}]} {
    %c0 = arith.constant 0 : index
    %c0_0 = arith.constant 0 : index
    %0 = vector.load %arg1[%c0, %c0_0] : memref<6x128xf32, #tpu.memory_space<vmem>>, vector<6x128xf32>
    %c0_1 = arith.constant 0 : index
    %c0_2 = arith.constant 0 : index
    %1 = vector.load %arg2[%c0_1, %c0_2] : memref<32x6xf32, #tpu.memory_space<vmem>>, vector<32x6xf32>
    %2 = vector.extract_strided_slice %1 {offsets = [0, 0], sizes = [32, 1], strides = [1, 1]} : vector<32x6xf32> to vector<32x1xf32>
    %3 = vector.extract_strided_slice %0 {offsets = [0, 0], sizes = [1, 128], strides = [1, 1]} : vector<6x128xf32> to vector<1x128xf32>
    %4 = vector.broadcast %2 : vector<32x1xf32> to vector<32x128xf32>
    %5 = vector.broadcast %3 : vector<1x128xf32> to vector<32x128xf32>
    %6 = arith.mulf %4, %5 : vector<32x128xf32>
    %7 = vector.extract_strided_slice %1 {offsets = [0, 1], sizes = [32, 1], strides = [1, 1]} : vector<32x6xf32> to vector<32x1xf32>
    %8 = vector.extract_strided_slice %0 {offsets = [1, 0], sizes = [1, 128], strides = [1, 1]} : vector<6x128xf32> to vector<1x128xf32>
    %9 = vector.broadcast %7 : vector<32x1xf32> to vector<32x128xf32>
    %10 = vector.broadcast %8 : vector<1x128xf32> to vector<32x128xf32>
    %11 = arith.mulf %9, %10 : vector<32x128xf32>
    %12 = arith.addf %6, %11 : vector<32x128xf32>
    %13 = vector.extract_strided_slice %1 {offsets = [0, 2], sizes = [32, 1], strides = [1, 1]} : vector<32x6xf32> to vector<32x1xf32>
    %14 = vector.extract_strided_slice %0 {offsets = [2, 0], sizes = [1, 128], strides = [1, 1]} : vector<6x128xf32> to vector<1x128xf32>
    %15 = vector.broadcast %13 : vector<32x1xf32> to vector<32x128xf32>
    %16 = vector.broadcast %14 : vector<1x128xf32> to vector<32x128xf32>
    %17 = arith.mulf %15, %16 : vector<32x128xf32>
    %18 = arith.addf %12, %17 : vector<32x128xf32>
    %19 = vector.extract_strided_slice %1 {offsets = [0, 3], sizes = [32, 1], strides = [1, 1]} : vector<32x6xf32> to vector<32x1xf32>
    %20 = vector.extract_strided_slice %0 {offsets = [3, 0], sizes = [1, 128], strides = [1, 1]} : vector<6x128xf32> to vector<1x128xf32>
    %21 = vector.broadcast %19 : vector<32x1xf32> to vector<32x128xf32>
    %22 = vector.broadcast %20 : vector<1x128xf32> to vector<32x128xf32>
    %23 = arith.mulf %21, %22 : vector<32x128xf32>
    %24 = arith.addf %18, %23 : vector<32x128xf32>
    %25 = vector.extract_strided_slice %1 {offsets = [0, 4], sizes = [32, 1], strides = [1, 1]} : vector<32x6xf32> to vector<32x1xf32>
    %26 = vector.extract_strided_slice %0 {offsets = [4, 0], sizes = [1, 128], strides = [1, 1]} : vector<6x128xf32> to vector<1x128xf32>
    %27 = vector.broadcast %25 : vector<32x1xf32> to vector<32x128xf32>
    %28 = vector.broadcast %26 : vector<1x128xf32> to vector<32x128xf32>
    %29 = arith.mulf %27, %28 : vector<32x128xf32>
    %30 = arith.addf %24, %29 : vector<32x128xf32>
    %31 = vector.extract_strided_slice %1 {offsets = [0, 5], sizes = [32, 1], strides = [1, 1]} : vector<32x6xf32> to vector<32x1xf32>
    %32 = vector.extract_strided_slice %0 {offsets = [5, 0], sizes = [1, 128], strides = [1, 1]} : vector<6x128xf32> to vector<1x128xf32>
    %33 = vector.broadcast %31 : vector<32x1xf32> to vector<32x128xf32>
    %34 = vector.broadcast %32 : vector<1x128xf32> to vector<32x128xf32>
    %35 = arith.mulf %33, %34 : vector<32x128xf32>
    %36 = arith.addf %30, %35 : vector<32x128xf32>
    %c0_3 = arith.constant 0 : index
    %c0_4 = arith.constant 0 : index
    %37 = vector.load %arg3[%c0_3, %c0_4] : memref<32x1xf32, #tpu.memory_space<vmem>>, vector<32x1xf32>
    %38 = vector.broadcast %37 : vector<32x1xf32> to vector<32x128xf32>
    %39 = arith.addf %36, %38 : vector<32x128xf32>
    %cst = arith.constant 0.000000e+00 : f32
    %40 = vector.broadcast %cst : f32 to vector<32x128xf32>
    %41 = arith.maximumf %39, %40 : vector<32x128xf32>
    %c0_5 = arith.constant 0 : index
    %c0_6 = arith.constant 0 : index
    %c0_7 = arith.constant 0 : index
    %42 = vector.load %arg4[%c0_5, %c0_6, %c0_7] : memref<2x32x32xbf16, #tpu.memory_space<vmem>>, vector<1x32x32xbf16>
    %43 = vector.shape_cast %42 : vector<1x32x32xbf16> to vector<32x32xbf16>
    %44 = arith.truncf %41 : vector<32x128xf32> to vector<32x128xbf16>
    %cst_8 = arith.constant dense<0.000000e+00> : vector<32x128xf32>
    %45 = tpu.matmul %43, %44, %cst_8 {dimension_numbers = #tpu.dot_dimension_numbers<[1], [0], [0], [1], [0, 0, 1, 1], [], []>} : vector<32x32xbf16>, vector<32x128xbf16>, vector<32x128xf32> -> vector<32x128xf32>
    %c0_9 = arith.constant 0 : index
    %c0_10 = arith.constant 0 : index
    %c0_11 = arith.constant 0 : index
    %46 = vector.load %arg5[%c0_9, %c0_10, %c0_11] : memref<2x32x1xf32, #tpu.memory_space<vmem>>, vector<1x32x1xf32>
    %47 = vector.shape_cast %46 : vector<1x32x1xf32> to vector<32x1xf32>
    %48 = vector.broadcast %47 : vector<32x1xf32> to vector<32x128xf32>
    %49 = arith.addf %45, %48 : vector<32x128xf32>
    %cst_12 = arith.constant 0.000000e+00 : f32
    %50 = vector.broadcast %cst_12 : f32 to vector<32x128xf32>
    %51 = arith.maximumf %49, %50 : vector<32x128xf32>
    %c1 = arith.constant 1 : index
    %c0_13 = arith.constant 0 : index
    %c0_14 = arith.constant 0 : index
    %52 = vector.load %arg4[%c1, %c0_13, %c0_14] : memref<2x32x32xbf16, #tpu.memory_space<vmem>>, vector<1x32x32xbf16>
    %53 = vector.shape_cast %52 : vector<1x32x32xbf16> to vector<32x32xbf16>
    %54 = arith.truncf %51 : vector<32x128xf32> to vector<32x128xbf16>
    %cst_15 = arith.constant dense<0.000000e+00> : vector<32x128xf32>
    %55 = tpu.matmul %53, %54, %cst_15 {dimension_numbers = #tpu.dot_dimension_numbers<[1], [0], [0], [1], [0, 0, 1, 1], [], []>} : vector<32x32xbf16>, vector<32x128xbf16>, vector<32x128xf32> -> vector<32x128xf32>
    %c1_16 = arith.constant 1 : index
    %c0_17 = arith.constant 0 : index
    %c0_18 = arith.constant 0 : index
    %56 = vector.load %arg5[%c1_16, %c0_17, %c0_18] : memref<2x32x1xf32, #tpu.memory_space<vmem>>, vector<1x32x1xf32>
    %57 = vector.shape_cast %56 : vector<1x32x1xf32> to vector<32x1xf32>
    %58 = vector.broadcast %57 : vector<32x1xf32> to vector<32x128xf32>
    %59 = arith.addf %55, %58 : vector<32x128xf32>
    %cst_19 = arith.constant 0.000000e+00 : f32
    %60 = vector.broadcast %cst_19 : f32 to vector<32x128xf32>
    %61 = arith.maximumf %59, %60 : vector<32x128xf32>
    %c0_20 = arith.constant 0 : index
    %c0_21 = arith.constant 0 : index
    %62 = vector.load %arg6[%c0_20, %c0_21] : memref<32x1xf32, #tpu.memory_space<vmem>>, vector<32x1xf32>
    %63 = vector.broadcast %62 : vector<32x1xf32> to vector<32x128xf32>
    %64 = arith.mulf %61, %63 : vector<32x128xf32>
    %cst_22 = arith.constant dense<0.000000e+00> : vector<128xf32>
    %65 = vector.multi_reduction <add>, %64, %cst_22 [0] : vector<32x128xf32> to vector<128xf32>
    %66 = vector.shape_cast %65 : vector<128xf32> to vector<1x128xf32>
    %c0_23 = arith.constant 0 : index
    %67 = memref.load %arg7[%c0_23] : memref<1xf32, #tpu.memory_space<smem>>
    %68 = vector.broadcast %67 : f32 to vector<1x128xf32>
    %69 = arith.addf %66, %68 : vector<1x128xf32>
    %c0_24 = arith.constant 0 : index
    %c0_25 = arith.constant 0 : index
    %70 = vector.load %arg8[%c0_24, %c0_25] : memref<1x128xf32, #tpu.memory_space<vmem>>, vector<1x128xf32>
    tpu.vector_store %arg8[%c0_24, %c0_25], %69 {strides = array<i32>} : memref<1x128xf32, #tpu.memory_space<vmem>>, vector<1x128xf32>,
    return
  }
  func.func @transform_0(%arg0: i32) -> (i32, i32) {
    %c0_i32 = arith.constant 0 : i32
    %c0_i32_0 = arith.constant 0 : i32
    return %c0_i32, %arg0 : i32, i32
  }
  func.func @transform_1(%arg0: i32) -> (i32, i32) {
    %c0_i32 = arith.constant 0 : i32
    %c0_i32_0 = arith.constant 0 : i32
    %c0_i32_1 = arith.constant 0 : i32
    return %c0_i32, %c0_i32_0 : i32, i32
  }
  func.func @transform_2(%arg0: i32) -> (i32, i32) {
    %c0_i32 = arith.constant 0 : i32
    %c0_i32_0 = arith.constant 0 : i32
    %c0_i32_1 = arith.constant 0 : i32
    return %c0_i32, %c0_i32_0 : i32, i32
  }
  func.func @transform_3(%arg0: i32) -> (i32, i32, i32) {
    %c0_i32 = arith.constant 0 : i32
    %c0_i32_0 = arith.constant 0 : i32
    %c0_i32_1 = arith.constant 0 : i32
    %c0_i32_2 = arith.constant 0 : i32
    return %c0_i32, %c0_i32_0, %c0_i32_1 : i32, i32, i32
  }
  func.func @transform_4(%arg0: i32) -> (i32, i32, i32) {
    %c0_i32 = arith.constant 0 : i32
    %c0_i32_0 = arith.constant 0 : i32
    %c0_i32_1 = arith.constant 0 : i32
    %c0_i32_2 = arith.constant 0 : i32
    return %c0_i32, %c0_i32_0, %c0_i32_1 : i32, i32, i32
  }
  func.func @transform_5(%arg0: i32) -> (i32, i32) {
    %c0_i32 = arith.constant 0 : i32
    %c0_i32_0 = arith.constant 0 : i32
    %c0_i32_1 = arith.constant 0 : i32
    return %c0_i32, %c0_i32_0 : i32, i32
  }
  func.func @transform_6(%arg0: i32) -> i32 {
    %c0_i32 = arith.constant 0 : i32
    %c0_i32_0 = arith.constant 0 : i32
    return %c0_i32 : i32
  }
  func.func @transform_7(%arg0: i32) -> (i32, i32) {
    %c0_i32 = arith.constant 0 : i32
    %c0_i32_0 = arith.constant 0 : i32
    return %c0_i32, %arg0 : i32, i32
  }
}

</mosaic_0001>

<llo_original>
// kernel: tpu_custom_call.1
$region0: #{tpu_custom_call.1}
  #allocation0 [shape = 'u32[]', space=smem, size = 0x4, offset = 0x4, fixed_abs, tag = 'smem constant byte address 0x4 - core index']
  #allocation1 [shape = 'u32[144,128]{1,0:T(1,128)}', space=vmem, size = 0x12000, scoped, tag = 'internal scratch']
  #allocation2 [shape = 'f32[1]{0:T(128)S(6)}', space=smem, size = 0x200, scoped, tag = 'scoped memory for tpu_custom_call.1']
  %s0 = inlined_call_operand.vmem [shape: f32[6,256], index: 0, kind: input, shape index: {}]
  %s1 = inlined_call_operand.vmem [shape: f32[32,6], index: 1, kind: input, shape index: {}]
  %s2 = inlined_call_operand.vmem [shape: f32[32,1], index: 2, kind: input, shape index: {}]
  %s3 = inlined_call_operand.vmem [shape: bf16[2,32,32], index: 3, kind: input, shape index: {}]
  %s4 = inlined_call_operand.vmem [shape: f32[2,32,1], index: 4, kind: input, shape index: {}]
  %s5 = inlined_call_operand.vmem [shape: f32[32,1], index: 5, kind: input, shape index: {}]
  %s6 = inlined_call_operand.<no memory space> [shape: f32[1], index: 6, kind: input, shape index: {}]
  %s7 = inlined_call_operand.hbm [shape: f32[1,256], index: 7, kind: output, shape index: {}]
  %s8 = sld [smem:[#allocation0]]
  $region61: #{tpu_custom_call.1} parent=0
    _
  %s10 = ssub.s32 1, %s8
  %s11 = scalar_select 0, %s10, %s8
  %12 = sst [smem:[#allocation2]] %s6
  $region1: #{tpu_custom_call.1} parent=0
    #allocation3 [shape = 'u8[1024]{0}', space=vmem, size = 0x400, scoped, tag = 'output window, operand 0']
    #allocation4 [shape = 's32[2]{0}', space=sflag, size = 0x8, scoped, tag = 'scoped memory for tpu_custom_call.1']
    %13 = vsyncpa [#allocation4], 0
    %s14 = scalar_lea.sflag [#allocation4], 1
    %15 = vsyncpa %s14, 0
    loop: start=0, step=1, limit=4
    $region2: #{tpu_custom_call.1} parent=1 // loop_pre_header
      _
    $region3: #{tpu_custom_call.1} parent=1 // loop_header
      %s17 = sphi 0, %s21
      %p18 = scmp.ge.s32.totalorder %s17, 4
      %s27 = sphi 0, %s29
      %s30 = sphi 0, %s27
      %s31 = sphi 0, %s30
      %s47 = sphi 0, %s31
      %s51 = sphi 0, %s51
      %s53 = sphi 0, %s51
      %s54 = sphi 0, %s53
      %s68 = sphi 0, %s54
      %s72 = sphi 0, %s72
      %s74 = sphi 0, %s72
      %s75 = sphi 0, %s74
      %s89 = sphi 0, %s75
      %s93 = sphi 0, %s93
      %s95 = sphi 0, %s93
      %s96 = sphi 0, %s95
      %s110 = sphi 0, %s96
      %s114 = sphi 0, %s114
      %s116 = sphi 0, %s114
      %s117 = sphi 0, %s116
      %s131 = sphi 0, %s117
      %s135 = sphi 0, %s135
      %s137 = sphi 0, %s135
      %s138 = sphi 0, %s137
      %s152 = sphi 0, %s138
      %s156 = sphi 0, %s156
      %s158 = sphi 0, %s156
      %s159 = sphi 0, %s158
      %s173 = sphi 0, %s159
      %s179 = sphi 0, %s181
      %s182 = sphi 0, %s179
      %s183 = sphi 0, %s182
      %s199 = sphi 0, %s183
    $region4: #{tpu_custom_call.1} parent=1 // loop_header_branch
      %20 = sbr.rel (%p18) target = $region8
    $region5: #{tpu_custom_call.1} parent=1 // loop_body
      %s22 = ssub.s32 %s17, 1
      %s23 = ssub.s32 %s17, 2
      %s24 = sadd.s32 %s17, 1
      %s25 = ssub.s32 %s17, %s24
      %p26 = scmp.eq.s32.totalorder %s25, 0
      %s28 = sadd.s32 %s27, 1
      %s29 = scalar_select %p26, %s27, %s28
      %p32 = pneg %p26
      %p33 = scmp.eq.s32.totalorder %s17, 1
      %p34 = por %p32, %p33
      %p35 = scmp.ne.s32.totalorder %s27, %s30
      %p36 = scmp.eq.s32.totalorder %s17, 0
      %p37 = por %p35, %p36
      %p38 = scmp.ne.s32.totalorder %s27, %s30
      %p39 = scmp.eq.s32.totalorder %s22, 1
      %p40 = por %p38, %p39
      %p41 = scmp.ne.s32.totalorder %s30, %s31
      %p42 = scmp.eq.s32.totalorder %s22, 0
      %p43 = por %p41, %p42
      %p44 = scmp.ne.s32.totalorder %s30, %s31
      %p45 = scmp.eq.s32.totalorder %s23, 1
      %p46 = por %p44, %p45
      %p48 = scmp.ne.s32.totalorder %s31, %s47
      %p49 = scmp.eq.s32.totalorder %s23, 0
      %p50 = por %p48, %p49
      %s52 = sadd.s32 %s51, 1
      %p55 = scmp.eq.s32.totalorder %s17, 1
      %p56 = scmp.ne.s32.totalorder %s51, %s53
      %p57 = scmp.eq.s32.totalorder %s17, 0
      %p58 = por %p56, %p57
      %p59 = scmp.ne.s32.totalorder %s51, %s53
      %p60 = scmp.eq.s32.totalorder %s22, 1
      %p61 = por %p59, %p60
      %p62 = scmp.ne.s32.totalorder %s53, %s54
      %p63 = scmp.eq.s32.totalorder %s22, 0
      %p64 = por %p62, %p63
      %p65 = scmp.ne.s32.totalorder %s53, %s54
      %p66 = scmp.eq.s32.totalorder %s23, 1
      %p67 = por %p65, %p66
      %p69 = scmp.ne.s32.totalorder %s54, %s68
      %p70 = scmp.eq.s32.totalorder %s23, 0
      %p71 = por %p69, %p70
      %s73 = sadd.s32 %s72, 1
      %p76 = scmp.eq.s32.totalorder %s17, 1
      %p77 = scmp.ne.s32.totalorder %s72, %s74
      %p78 = scmp.eq.s32.totalorder %s17, 0
      %p79 = por %p77, %p78
      %p80 = scmp.ne.s32.totalorder %s72, %s74
      %p81 = scmp.eq.s32.totalorder %s22, 1
      %p82 = por %p80, %p81
      %p83 = scmp.ne.s32.totalorder %s74, %s75
      %p84 = scmp.eq.s32.totalorder %s22, 0
      %p85 = por %p83, %p84
      %p86 = scmp.ne.s32.totalorder %s74, %s75
      %p87 = scmp.eq.s32.totalorder %s23, 1
      %p88 = por %p86, %p87
      %p90 = scmp.ne.s32.totalorder %s75, %s89
      %p91 = scmp.eq.s32.totalorder %s23, 0
      %p92 = por %p90, %p91
      %s94 = sadd.s32 %s93, 1
      %p97 = scmp.eq.s32.totalorder %s17, 1
      %p98 = scmp.ne.s32.totalorder %s93, %s95
      %p99 = scmp.eq.s32.totalorder %s17, 0
      %p100 = por %p98, %p99
      %p101 = scmp.ne.s32.totalorder %s93, %s95
      %p102 = scmp.eq.s32.totalorder %s22, 1
      %p103 = por %p101, %p102
      %p104 = scmp.ne.s32.totalorder %s95, %s96
      %p105 = scmp.eq.s32.totalorder %s22, 0
      %p106 = por %p104, %p105
      %p107 = scmp.ne.s32.totalorder %s95, %s96
      %p108 = scmp.eq.s32.totalorder %s23, 1
      %p109 = por %p107, %p108
      %p111 = scmp.ne.s32.totalorder %s96, %s110
      %p112 = scmp.eq.s32.totalorder %s23, 0
      %p113 = por %p111, %p112
      %s115 = sadd.s32 %s114, 1
      %p118 = scmp.eq.s32.totalorder %s17, 1
      %p119 = scmp.ne.s32.totalorder %s114, %s116
      %p120 = scmp.eq.s32.totalorder %s17, 0
      %p121 = por %p119, %p120
      %p122 = scmp.ne.s32.totalorder %s114, %s116
      %p123 = scmp.eq.s32.totalorder %s22, 1
      %p124 = por %p122, %p123
      %p125 = scmp.ne.s32.totalorder %s116, %s117
      %p126 = scmp.eq.s32.totalorder %s22, 0
      %p127 = por %p125, %p126
      %p128 = scmp.ne.s32.totalorder %s116, %s117
      %p129 = scmp.eq.s32.totalorder %s23, 1
      %p130 = por %p128, %p129
      %p132 = scmp.ne.s32.totalorder %s117, %s131
      %p133 = scmp.eq.s32.totalorder %s23, 0
      %p134 = por %p132, %p133
      %s136 = sadd.s32 %s135, 1
      %p139 = scmp.eq.s32.totalorder %s17, 1
      %p140 = scmp.ne.s32.totalorder %s135, %s137
      %p141 = scmp.eq.s32.totalorder %s17, 0
      %p142 = por %p140, %p141
      %p143 = scmp.ne.s32.totalorder %s135, %s137
      %p144 = scmp.eq.s32.totalorder %s22, 1
      %p145 = por %p143, %p144
      %p146 = scmp.ne.s32.totalorder %s137, %s138
      %p147 = scmp.eq.s32.totalorder %s22, 0
      %p148 = por %p146, %p147
      %p149 = scmp.ne.s32.totalorder %s137, %s138
      %p150 = scmp.eq.s32.totalorder %s23, 1
      %p151 = por %p149, %p150
      %p153 = scmp.ne.s32.totalorder %s138, %s152
      %p154 = scmp.eq.s32.totalorder %s23, 0
      %p155 = por %p153, %p154
      %s157 = sadd.s32 %s156, 1
      %p160 = scmp.eq.s32.totalorder %s17, 1
      %p161 = scmp.ne.s32.totalorder %s156, %s158
      %p162 = scmp.eq.s32.totalorder %s17, 0
      %p163 = por %p161, %p162
      %p164 = scmp.ne.s32.totalorder %s156, %s158
      %p165 = scmp.eq.s32.totalorder %s22, 1
      %p166 = por %p164, %p165
      %p167 = scmp.ne.s32.totalorder %s158, %s159
      %p168 = scmp.eq.s32.totalorder %s22, 0
      %p169 = por %p167, %p168
      %p170 = scmp.ne.s32.totalorder %s158, %s159
      %p171 = scmp.eq.s32.totalorder %s23, 1
      %p172 = por %p170, %p171
      %p174 = scmp.ne.s32.totalorder %s159, %s173
      %p175 = scmp.eq.s32.totalorder %s23, 0
      %p176 = por %p174, %p175
      %s177 = ssub.s32 %s17, %s24
      %p178 = scmp.eq.s32.totalorder %s177, 0
      %s180 = sadd.s32 %s179, 1
      %s181 = scalar_select %p178, %s179, %s180
      %p184 = pneg %p178
      %p185 = scmp.eq.s32.totalorder %s17, 1
      %p186 = por %p184, %p185
      %p187 = scmp.ne.s32.totalorder %s179, %s182
      %p188 = scmp.eq.s32.totalorder %s17, 0
      %p189 = por %p187, %p188
      %p190 = scmp.ne.s32.totalorder %s179, %s182
      %p191 = scmp.eq.s32.totalorder %s22, 1
      %p192 = por %p190, %p191
      %p193 = scmp.ne.s32.totalorder %s182, %s183
      %p194 = scmp.eq.s32.totalorder %s22, 0
      %p195 = por %p193, %p194
      %p196 = scmp.ne.s32.totalorder %s182, %s183
      %p197 = scmp.eq.s32.totalorder %s23, 1
      %p198 = por %p196, %p197
      %p200 = scmp.ne.s32.totalorder %s183, %s199
      %p201 = scmp.eq.s32.totalorder %s23, 0
      %p202 = por %p200, %p201
      %p203 = scmp.le.s32.totalorder 1, %s17
      %p204 = scmp.lt.s32.totalorder %s17, 3
      %p205 = pnand %p203, %p204
      %p206 = pneg %p205
      // Predicated region
      $region9: #{tpu_custom_call.1} parent=5 // pred_check
        _
      $region10: #{tpu_custom_call.1} parent=5 // pred_check_branch
        %208 = sbr.rel (%p205) target = $region12
      $region11: #{tpu_custom_call.1} parent=5 // pred_region
        %s209 = ssub.s32 %s17, 1
        // Predicated region
        $region13: #{tpu_custom_call.1} parent=11 // pred_check
          %p210 = pneg %p64
        $region14: #{tpu_custom_call.1} parent=11 // pred_check_branch
          %212 = sbr.rel (%p210) target = $region16
        $region15: #{tpu_custom_call.1} parent=11 // pred_region
          _
        $region16: #{tpu_custom_call.1} parent=11 // pred_fallthru
          _
        // Predicated region
        $region17: #{tpu_custom_call.1} parent=11 // pred_check
          %p213 = pneg %p85
        $region18: #{tpu_custom_call.1} parent=11 // pred_check_branch
          %215 = sbr.rel (%p213) target = $region20
        $region19: #{tpu_custom_call.1} parent=11 // pred_region
          _
        $region20: #{tpu_custom_call.1} parent=11 // pred_fallthru
          _
        // Predicated region
        $region21: #{tpu_custom_call.1} parent=11 // pred_check
          %p216 = pneg %p106
        $region22: #{tpu_custom_call.1} parent=11 // pred_check_branch
          %218 = sbr.rel (%p216) target = $region24
        $region23: #{tpu_custom_call.1} parent=11 // pred_region
          _
        $region24: #{tpu_custom_call.1} parent=11 // pred_fallthru
          _
        // Predicated region
        $region25: #{tpu_custom_call.1} parent=11 // pred_check
          %p219 = pneg %p127
        $region26: #{tpu_custom_call.1} parent=11 // pred_check_branch
          %221 = sbr.rel (%p219) target = $region28
        $region27: #{tpu_custom_call.1} parent=11 // pred_region
          _
        $region28: #{tpu_custom_call.1} parent=11 // pred_fallthru
          _
        // Predicated region
        $region29: #{tpu_custom_call.1} parent=11 // pred_check
          %p222 = pneg %p148
        $region30: #{tpu_custom_call.1} parent=11 // pred_check_branch
          %224 = sbr.rel (%p222) target = $region32
        $region31: #{tpu_custom_call.1} parent=11 // pred_region
          _
        $region32: #{tpu_custom_call.1} parent=11 // pred_fallthru
          _
        // Predicated region
        $region33: #{tpu_custom_call.1} parent=11 // pred_check
          %p225 = pneg %p169
        $region34: #{tpu_custom_call.1} parent=11 // pred_check_branch
          %227 = sbr.rel (%p225) target = $region36
        $region35: #{tpu_custom_call.1} parent=11 // pred_region
          _
        $region36: #{tpu_custom_call.1} parent=11 // pred_fallthru
          _
      $region12: #{tpu_custom_call.1} parent=5 // pred_fallthru
        _
      %p228 = scmp.lt.s32.totalorder %s17, 2
      // Predicated region
      $region37: #{tpu_custom_call.1} parent=5 // pred_check
        %p229 = pneg %p228
      $region38: #{tpu_custom_call.1} parent=5 // pred_check_branch
        %231 = sbr.rel (%p229) target = $region40
      $region39: #{tpu_custom_call.1} parent=5 // pred_region
        // Predicated region
        $region41: #{tpu_custom_call.1} parent=39 // pred_check
          %p232 = pneg %p37
        $region42: #{tpu_custom_call.1} parent=39 // pred_check_branch
          %234 = sbr.rel (%p232) target = $region44
        $region43: #{tpu_custom_call.1} parent=39 // pred_region
          %p235 = scmp.lt.s32.totalorder %s17, 1
          %s236 = scalar_select %p235, %s17, 1
          %s237 = smul.addr %s236, 8
          %s238 = scalar_lea.vmem %s0, %s237
        $region44: #{tpu_custom_call.1} parent=39 // pred_fallthru
          _
      $region40: #{tpu_custom_call.1} parent=5 // pred_fallthru
        _
      %p239 = scmp.le.s32.totalorder 1, %s17
      %p240 = scmp.lt.s32.totalorder %s17, 3
      %p241 = pnand %p239, %p240
      %p242 = pneg %p241
      // Predicated region
      $region45: #{tpu_custom_call.1} parent=5 // pred_check
        _
      $region46: #{tpu_custom_call.1} parent=5 // pred_check_branch
        %244 = sbr.rel (%p241) target = $region48
      $region47: #{tpu_custom_call.1} parent=5 // pred_region
        %s245 = ssub.s32 %s17, 1
        %p246 = scmp.lt.s32.totalorder %s22, 1
        %s247 = scalar_select %p246, %s22, 1
        %s248 = smul.addr %s247, 8
        %s249 = scalar_lea.vmem %s0, %s248
        %p250 = pneg %p43
        %p251 = pneg %p40
        %p252 = pneg %p64
        %p253 = pneg %p61
        %p254 = pneg %p85
        %p255 = pneg %p82
        %p256 = pneg %p106
        %p257 = pneg %p103
        %p258 = pneg %p127
        %p259 = pneg %p124
        %p260 = pneg %p148
        %p261 = pneg %p145
        %p262 = pneg %p169
        %p263 = pneg %p166
        %p264 = pneg %p195
        %p265 = pneg %p192
        %s266 = sand.u32 %s182, 1
        %s267 = scalar_lea.sflag [#allocation4], %s266
        %s268 = sand.u32 %s182, 1
        %s269 = scalar_lea.vmem [#allocation3], %s268
        %p270 = scmp.lt.s32.totalorder %s22, 1
        %s271 = scalar_select %p270, %s22, 1
        %s272 = smul.addr %s271, 8
        %s273 = scalar_lea.vmem %s0, %s272
        %v275 = vld [vmem:[%s273] sm:$0x3f]
        %v276 = vld [vmem:[%s1] sm:$0xff]
        %v277 = vld [vmem:[%s1 + $0x8] sm:$0xff]
        %v278 = vld [vmem:[%s1 + $0x10] sm:$0xff]
        %v279 = vld [vmem:[%s1 + $0x18] sm:$0xff]
        %281 = vset.pattern.permute.xlu0 0
        %282 = vperm.xlu0 %281, %v276
        %v283 = vpop.permute.xlu0 %282
        %286 = vset.pattern.permute.xlu0 0
        %287 = vperm.xlu0 %286, %v277
        %v288 = vpop.permute.xlu0 %287
        %291 = vset.pattern.permute.xlu0 0
        %292 = vperm.xlu0 %291, %v278
        %v293 = vpop.permute.xlu0 %292
        %296 = vset.pattern.permute.xlu0 0
        %297 = vperm.xlu0 %296, %v279
        %v298 = vpop.permute.xlu0 %297
        %v300 = vlaneseq
        %v301 = vshrl.u32 %v300, 7
        %v302 = vsub.s32 0, %v301
        %v303 = vrot.slane %v275, %v302
        %v304 = vmul.f32 %v283, %v303
        %v305 = vmul.f32 %v288, %v303
        %v306 = vmul.f32 %v293, %v303
        %v307 = vmul.f32 %v298, %v303
        %308 = vset.pattern.permute.xlu0 1
        %309 = vperm.xlu0 %308, %v276
        %v310 = vpop.permute.xlu0 %309
        %312 = vset.pattern.permute.xlu0 1
        %313 = vperm.xlu0 %312, %v277
        %v314 = vpop.permute.xlu0 %313
        %316 = vset.pattern.permute.xlu0 1
        %317 = vperm.xlu0 %316, %v278
        %v318 = vpop.permute.xlu0 %317
        %320 = vset.pattern.permute.xlu0 1
        %321 = vperm.xlu0 %320, %v279
        %v322 = vpop.permute.xlu0 %321
        %v324 = vlaneseq
        %v325 = vshrl.u32 %v324, 7
        %v326 = vsub.s32 1, %v325
        %v327 = vrot.slane %v275, %v326
        %v328 = vmul.f32 %v310, %v327
        %v329 = vmul.f32 %v314, %v327
        %v330 = vmul.f32 %v318, %v327
        %v331 = vmul.f32 %v322, %v327
        %v332 = vadd.f32 %v304, %v328
        %v333 = vadd.f32 %v305, %v329
        %v334 = vadd.f32 %v306, %v330
        %v335 = vadd.f32 %v307, %v331
        %336 = vset.pattern.permute.xlu0 2
        %337 = vperm.xlu0 %336, %v276
        %v338 = vpop.permute.xlu0 %337
        %340 = vset.pattern.permute.xlu0 2
        %341 = vperm.xlu0 %340, %v277
        %v342 = vpop.permute.xlu0 %341
        %344 = vset.pattern.permute.xlu0 2
        %345 = vperm.xlu0 %344, %v278
        %v346 = vpop.permute.xlu0 %345
        %348 = vset.pattern.permute.xlu0 2
        %349 = vperm.xlu0 %348, %v279
        %v350 = vpop.permute.xlu0 %349
        %v352 = vlaneseq
        %v353 = vshrl.u32 %v352, 7
        %v354 = vsub.s32 2, %v353
        %v355 = vrot.slane %v275, %v354
        %v356 = vmul.f32 %v338, %v355
        %v357 = vmul.f32 %v342, %v355
        %v358 = vmul.f32 %v346, %v355
        %v359 = vmul.f32 %v350, %v355
        %v360 = vadd.f32 %v332, %v356
        %v361 = vadd.f32 %v333, %v357
        %v362 = vadd.f32 %v334, %v358
        %v363 = vadd.f32 %v335, %v359
        %364 = vset.pattern.permute.xlu0 3
        %365 = vperm.xlu0 %364, %v276
        %v366 = vpop.permute.xlu0 %365
        %368 = vset.pattern.permute.xlu0 3
        %369 = vperm.xlu0 %368, %v277
        %v370 = vpop.permute.xlu0 %369
        %372 = vset.pattern.permute.xlu0 3
        %373 = vperm.xlu0 %372, %v278
        %v374 = vpop.permute.xlu0 %373
        %376 = vset.pattern.permute.xlu0 3
        %377 = vperm.xlu0 %376, %v279
        %v378 = vpop.permute.xlu0 %377
        %v380 = vlaneseq
        %v381 = vshrl.u32 %v380, 7
        %v382 = vsub.s32 3, %v381
        %v383 = vrot.slane %v275, %v382
        %v384 = vmul.f32 %v366, %v383
        %v385 = vmul.f32 %v370, %v383
        %v386 = vmul.f32 %v374, %v383
        %v387 = vmul.f32 %v378, %v383
        %v388 = vadd.f32 %v360, %v384
        %v389 = vadd.f32 %v361, %v385
        %v390 = vadd.f32 %v362, %v386
        %v391 = vadd.f32 %v363, %v387
        %392 = vset.pattern.permute.xlu0 4
        %393 = vperm.xlu0 %392, %v276
        %v394 = vpop.permute.xlu0 %393
        %396 = vset.pattern.permute.xlu0 4
        %397 = vperm.xlu0 %396, %v277
        %v398 = vpop.permute.xlu0 %397
        %400 = vset.pattern.permute.xlu0 4
        %401 = vperm.xlu0 %400, %v278
        %v402 = vpop.permute.xlu0 %401
        %404 = vset.pattern.permute.xlu0 4
        %405 = vperm.xlu0 %404, %v279
        %v406 = vpop.permute.xlu0 %405
        %v408 = vlaneseq
        %v409 = vshrl.u32 %v408, 7
        %v410 = vsub.s32 4, %v409
        %v411 = vrot.slane %v275, %v410
        %v412 = vmul.f32 %v394, %v411
        %v413 = vmul.f32 %v398, %v411
        %v414 = vmul.f32 %v402, %v411
        %v415 = vmul.f32 %v406, %v411
        %v416 = vadd.f32 %v388, %v412
        %v417 = vadd.f32 %v389, %v413
        %v418 = vadd.f32 %v390, %v414
        %v419 = vadd.f32 %v391, %v415
        %420 = vset.pattern.permute.xlu0 5
        %421 = vperm.xlu0 %420, %v276
        %v422 = vpop.permute.xlu0 %421
        %424 = vset.pattern.permute.xlu0 5
        %425 = vperm.xlu0 %424, %v277
        %v426 = vpop.permute.xlu0 %425
        %428 = vset.pattern.permute.xlu0 5
        %429 = vperm.xlu0 %428, %v278
        %v430 = vpop.permute.xlu0 %429
        %432 = vset.pattern.permute.xlu0 5
        %433 = vperm.xlu0 %432, %v279
        %v434 = vpop.permute.xlu0 %433
        %v436 = vlaneseq
        %v437 = vshrl.u32 %v436, 7
        %v438 = vsub.s32 5, %v437
        %v439 = vrot.slane %v275, %v438
        %v440 = vmul.f32 %v422, %v439
        %v441 = vmul.f32 %v426, %v439
        %v442 = vmul.f32 %v430, %v439
        %v443 = vmul.f32 %v434, %v439
        %v444 = vadd.f32 %v416, %v440
        %v445 = vadd.f32 %v417, %v441
        %v446 = vadd.f32 %v418, %v442
        %v447 = vadd.f32 %v419, %v443
        %v448 = vld [vmem:[%s2] sm:$0xff]
        %v449 = vld [vmem:[%s2 + $0x8] sm:$0xff]
        %v450 = vld [vmem:[%s2 + $0x10] sm:$0xff]
        %v451 = vld [vmem:[%s2 + $0x18] sm:$0xff]
        %453 = vset.pattern.permute.xlu0 0
        %454 = vperm.xlu0 %453, %v448
        %v455 = vpop.permute.xlu0 %454
        %458 = vset.pattern.permute.xlu0 0
        %459 = vperm.xlu0 %458, %v449
        %v460 = vpop.permute.xlu0 %459
        %463 = vset.pattern.permute.xlu0 0
        %464 = vperm.xlu0 %463, %v450
        %v465 = vpop.permute.xlu0 %464
        %468 = vset.pattern.permute.xlu0 0
        %469 = vperm.xlu0 %468, %v451
        %v470 = vpop.permute.xlu0 %469
        %v472 = vadd.f32 %v444, %v455
        %v473 = vadd.f32 %v445, %v460
        %v474 = vadd.f32 %v446, %v465
        %v475 = vadd.f32 %v447, %v470
        %v476 = vmax.f32 %v472, 0.0
        %v477 = vmax.f32 %v473, 0.0
        %v478 = vmax.f32 %v474, 0.0
        %v479 = vmax.f32 %v475, 0.0
        %v480 = vld [vmem:[%s3] sm:$0xf]
        %v481 = vld [vmem:[%s3 + $0x4] sm:$0xf]
        %v482 = vld [vmem:[%s3 + $0x8] sm:$0xf]
        %v483 = vld [vmem:[%s3 + $0xc] sm:$0xf]
        %v484 = vpack.c.bf16 %v477, %v476
        %v485 = vpack.c.bf16 %v479, %v478
        %v486 = vld [vmem:[%s4] sm:$0xff]
        %v487 = vld [vmem:[%s4 + $0x8] sm:$0xff]
        %v488 = vld [vmem:[%s4 + $0x10] sm:$0xff]
        %v489 = vld [vmem:[%s4 + $0x18] sm:$0xff]
        %491 = vset.pattern.permute.xlu0 0
        %492 = vperm.xlu0 %491, %v486
        %v493 = vpop.permute.xlu0 %492
        %496 = vset.pattern.permute.xlu0 0
        %497 = vperm.xlu0 %496, %v487
        %v498 = vpop.permute.xlu0 %497
        %501 = vset.pattern.permute.xlu0 0
        %502 = vperm.xlu0 %501, %v488
        %v503 = vpop.permute.xlu0 %502
        %506 = vset.pattern.permute.xlu0 0
        %507 = vperm.xlu0 %506, %v489
        %v508 = vpop.permute.xlu0 %507
        %v514 = vunpack.c.l.b16 %v480
        %v515 = vunpack.c.l.b16 %v481
        %v516 = vunpack.c.l.b16 %v482
        %v517 = vunpack.c.l.b16 %v483
        %v518 = vpack.c.b16 %v515, %v514
        %v519 = vpack.c.b16 %v517, %v516
        %vm520 = vcmask 261120
        %v522 = vsel %vm520, %v518, 0
        %v525 = vsel %vm520, %v519, 0
        %527 = vmatprep.subr.bf16.mxu0 0
        %528 = vmatpush1.bf16.msra.mxu0 %v484
        %529 = vmatprep.subr.bf16.mxu0 0
        %530 = vmatpush1.bf16.msra.mxu0 %v485
        %531 = vmatprep.subr.bf16.mxu0 0
        %532 = vmatpush1.bf16.msra.mxu0 0
        %533 = vmatprep.subr.bf16.mxu0 0
        %534 = vmatpush1.bf16.msra.mxu0 0
        %535 = vmatprep.subr.bf16.mxu0 0
        %536 = vmatpush1.bf16.msra.mxu0 0
        %537 = vmatprep.subr.bf16.mxu0 0
        %538 = vmatpush1.bf16.msra.mxu0 0
        %539 = vmatprep.subr.bf16.mxu0 0
        %540 = vmatpush1.bf16.msra.mxu0 0
        %541 = vmatprep.subr.bf16.mxu0 0
        %542 = vmatpush1.bf16.msra.mxu0 0
        %543 = vmatprep.subr.bf16.mxu0 0
        %544 = vmatpush1.bf16.msra.mxu0 0
        %545 = vmatprep.subr.bf16.mxu0 0
        %546 = vmatpush1.bf16.msra.mxu0 0
        %547 = vmatprep.subr.bf16.mxu0 0
        %548 = vmatpush1.bf16.msra.mxu0 0
        %549 = vmatprep.subr.bf16.mxu0 0
        %550 = vmatpush1.bf16.msra.mxu0 0
        %551 = vmatprep.subr.bf16.mxu0 0
        %552 = vmatpush1.bf16.msra.mxu0 0
        %553 = vmatprep.subr.bf16.mxu0 0
        %554 = vmatpush1.bf16.msra.mxu0 0
        %555 = vmatprep.subr.bf16.mxu0 0
        %556 = vmatpush1.bf16.msra.mxu0 0
        %557 = vmatprep.subr.bf16.mxu0 0
        %558 = vmatpush1.bf16.msra.mxu0 0
        %559 = vmatprep.mubr.bf16.mxu0 0
        %560 = vmatmul.mubr.bf16.gmra.mrb[0].mxu0 %v522
        %v561 = vpop.f32.mrb[0].mxu0
        %v562 = vadd.f32 %v493, %v561
        %v563 = vpop.f32.mrb[0].mxu0
        %v564 = vpop.f32.mrb[0].mxu0
        %v565 = vadd.f32 %v498, %v564
        %v566 = vpop.f32.mrb[0].mxu0
        %567 = vmatprep.mubr.bf16.mxu0 0
        %568 = vmatmul.mubr.bf16.gmra.mrb[0].mxu0 %v525
        %v569 = vpop.f32.mrb[0].mxu0
        %v570 = vadd.f32 %v503, %v569
        %v571 = vpop.f32.mrb[0].mxu0
        %v572 = vpop.f32.mrb[0].mxu0
        %v573 = vadd.f32 %v508, %v572
        %v574 = vpop.f32.mrb[0].mxu0
        %575 = vdwg.mxu0
        %v576 = vmax.f32 %v562, 0.0
        %v577 = vmax.f32 %v565, 0.0
        %v578 = vmax.f32 %v570, 0.0
        %v579 = vmax.f32 %v573, 0.0
        %s580 = scalar_lea.vmem %s3, 16
        %v581 = vld [vmem:[%s580] sm:$0xf]
        %v582 = vld [vmem:[%s580 + $0x4] sm:$0xf]
        %v583 = vld [vmem:[%s580 + $0x8] sm:$0xf]
        %v584 = vld [vmem:[%s580 + $0xc] sm:$0xf]
        %v585 = vpack.c.bf16 %v577, %v576
        %v586 = vpack.c.bf16 %v579, %v578
        %s587 = scalar_lea.vmem %s4, 32
        %v588 = vld [vmem:[%s587] sm:$0xff]
        %v589 = vld [vmem:[%s587 + $0x8] sm:$0xff]
        %v590 = vld [vmem:[%s587 + $0x10] sm:$0xff]
        %v591 = vld [vmem:[%s587 + $0x18] sm:$0xff]
        %593 = vset.pattern.permute.xlu0 0
        %594 = vperm.xlu0 %593, %v588
        %v595 = vpop.permute.xlu0 %594
        %598 = vset.pattern.permute.xlu0 0
        %599 = vperm.xlu0 %598, %v589
        %v600 = vpop.permute.xlu0 %599
        %603 = vset.pattern.permute.xlu0 0
        %604 = vperm.xlu0 %603, %v590
        %v605 = vpop.permute.xlu0 %604
        %608 = vset.pattern.permute.xlu0 0
        %609 = vperm.xlu0 %608, %v591
        %v610 = vpop.permute.xlu0 %609
        %v616 = vunpack.c.l.b16 %v581
        %v617 = vunpack.c.l.b16 %v582
        %v618 = vunpack.c.l.b16 %v583
        %v619 = vunpack.c.l.b16 %v584
        %v620 = vpack.c.b16 %v617, %v616
        %v621 = vpack.c.b16 %v619, %v618
        %v623 = vsel %vm520, %v620, 0
        %v626 = vsel %vm520, %v621, 0
        %628 = vmatprep.subr.bf16.mxu0 0
        %629 = vmatpush1.bf16.msra.mxu0 %v585
        %630 = vmatprep.subr.bf16.mxu0 0
        %631 = vmatpush1.bf16.msra.mxu0 %v586
        %632 = vmatprep.subr.bf16.mxu0 0
        %633 = vmatpush1.bf16.msra.mxu0 0
        %634 = vmatprep.subr.bf16.mxu0 0
        %635 = vmatpush1.bf16.msra.mxu0 0
        %636 = vmatprep.subr.bf16.mxu0 0
        %637 = vmatpush1.bf16.msra.mxu0 0
        %638 = vmatprep.subr.bf16.mxu0 0
        %639 = vmatpush1.bf16.msra.mxu0 0
        %640 = vmatprep.subr.bf16.mxu0 0
        %641 = vmatpush1.bf16.msra.mxu0 0
        %642 = vmatprep.subr.bf16.mxu0 0
        %643 = vmatpush1.bf16.msra.mxu0 0
        %644 = vmatprep.subr.bf16.mxu0 0
        %645 = vmatpush1.bf16.msra.mxu0 0
        %646 = vmatprep.subr.bf16.mxu0 0
        %647 = vmatpush1.bf16.msra.mxu0 0
        %648 = vmatprep.subr.bf16.mxu0 0
        %649 = vmatpush1.bf16.msra.mxu0 0
        %650 = vmatprep.subr.bf16.mxu0 0
        %651 = vmatpush1.bf16.msra.mxu0 0
        %652 = vmatprep.subr.bf16.mxu0 0
        %653 = vmatpush1.bf16.msra.mxu0 0
        %654 = vmatprep.subr.bf16.mxu0 0
        %655 = vmatpush1.bf16.msra.mxu0 0
        %656 = vmatprep.subr.bf16.mxu0 0
        %657 = vmatpush1.bf16.msra.mxu0 0
        %658 = vmatprep.subr.bf16.mxu0 0
        %659 = vmatpush1.bf16.msra.mxu0 0
        %660 = vmatprep.mubr.bf16.mxu0 0
        %661 = vmatmul.mubr.bf16.gmra.mrb[0].mxu0 %v623
        %v662 = vpop.f32.mrb[0].mxu0
        %v663 = vadd.f32 %v595, %v662
        %v664 = vpop.f32.mrb[0].mxu0
        %v665 = vpop.f32.mrb[0].mxu0
        %v666 = vadd.f32 %v600, %v665
        %v667 = vpop.f32.mrb[0].mxu0
        %668 = vmatprep.mubr.bf16.mxu0 0
        %669 = vmatmul.mubr.bf16.gmra.mrb[0].mxu0 %v626
        %v670 = vpop.f32.mrb[0].mxu0
        %v671 = vadd.f32 %v605, %v670
        %v672 = vpop.f32.mrb[0].mxu0
        %v673 = vpop.f32.mrb[0].mxu0
        %v674 = vadd.f32 %v610, %v673
        %v675 = vpop.f32.mrb[0].mxu0
        %676 = vdwg.mxu0
        %v677 = vmax.f32 %v663, 0.0
        %v678 = vmax.f32 %v666, 0.0
        %v679 = vmax.f32 %v671, 0.0
        %v680 = vmax.f32 %v674, 0.0
        %v681 = vld [vmem:[%s5] sm:$0xff]
        %v682 = vld [vmem:[%s5 + $0x8] sm:$0xff]
        %v683 = vld [vmem:[%s5 + $0x10] sm:$0xff]
        %v684 = vld [vmem:[%s5 + $0x18] sm:$0xff]
        %686 = vset.pattern.permute.xlu0 0
        %687 = vperm.xlu0 %686, %v681
        %v688 = vpop.permute.xlu0 %687
        %691 = vset.pattern.permute.xlu0 0
        %692 = vperm.xlu0 %691, %v682
        %v693 = vpop.permute.xlu0 %692
        %696 = vset.pattern.permute.xlu0 0
        %697 = vperm.xlu0 %696, %v683
        %v698 = vpop.permute.xlu0 %697
        %701 = vset.pattern.permute.xlu0 0
        %702 = vperm.xlu0 %701, %v684
        %v703 = vpop.permute.xlu0 %702
        %v705 = vmul.f32 %v677, %v688
        %v706 = vmul.f32 %v678, %v693
        %v707 = vmul.f32 %v679, %v698
        %v708 = vmul.f32 %v680, %v703
        %v709 = vadd.f32 %v705, %v706
        %v710 = vadd.f32 %v709, %v707
        %v711 = vadd.f32 %v710, %v708
        %v712 = vrot.slane %v711, 4
        %v713 = vadd.f32 %v711, %v712
        %v714 = vrot.slane %v713, 2
        %v715 = vadd.f32 %v713, %v714
        %v716 = vrot.slane %v715, 1
        %v717 = vadd.f32 %v715, %v716
        %s718 = sld [smem:[#allocation2]]
        %v719 = vstv %s718
        %v720 = vadd.f32 %v717, %v719
        %721 = vst [vmem:[%s269] sm:$0x1] %v720
        %s722 = sand.u32 %s182, 1
        %s723 = scalar_lea.sflag [#allocation4], %s722
        %s724 = sand.u32 %s182, 1
        %s725 = scalar_lea.vmem [#allocation3], %s724
        // Predicated region
        $region49: #{tpu_custom_call.1} parent=47 // pred_check
          %p726 = pneg %p192
        $region50: #{tpu_custom_call.1} parent=47 // pred_check_branch
          %728 = sbr.rel (%p726) target = $region52
        $region51: #{tpu_custom_call.1} parent=47 // pred_region
          %s730 = ssub.s32 16, 16
          %731 = vsyncadd %s723, %s730
          %s732 = smul.addr %s22, 16
          %s733 = scalar_lea.hbm %s7, %s732
          %s735 = sshll.u32 %s725, 4
          %s736 = int_to_ptr.vmem [resolvable:$true] %s735
          %738 = dma.vmem_to_hbm [thread:$0]  %s736, 16, %s733, %s723
        $region52: #{tpu_custom_call.1} parent=47 // pred_fallthru
          _
      $region48: #{tpu_custom_call.1} parent=5 // pred_fallthru
        _
      %p739 = scmp.le.s32.totalorder 2, %s17
      // Predicated region
      $region53: #{tpu_custom_call.1} parent=5 // pred_check
        %p740 = pneg %p739
      $region54: #{tpu_custom_call.1} parent=5 // pred_check_branch
        %742 = sbr.rel (%p740) target = $region56
      $region55: #{tpu_custom_call.1} parent=5 // pred_region
        %s743 = ssub.s32 %s17, 2
        // Predicated region
        $region57: #{tpu_custom_call.1} parent=55 // pred_check
          %p744 = pneg %p198
        $region58: #{tpu_custom_call.1} parent=55 // pred_check_branch
          %746 = sbr.rel (%p744) target = $region60
        $region59: #{tpu_custom_call.1} parent=55 // pred_region
          %s747 = sand.u32 %s183, 1
          %s748 = scalar_lea.sflag [#allocation4], %s747
          %s749 = sand.u32 %s183, 1
          %s750 = scalar_lea.vmem [#allocation3], %s749
          %751 = dma.done %s748, 16
        $region60: #{tpu_custom_call.1} parent=55 // pred_fallthru
          _
      $region56: #{tpu_custom_call.1} parent=5 // pred_fallthru
        _
    $region6: #{tpu_custom_call.1} parent=1 // loop_footer
      %s21 = sadd.s32 1, %s17
    $region7: #{tpu_custom_call.1} parent=1 // loop_footer_branch
      %16 = sbr.rel target = $region3
    $region8: #{tpu_custom_call.1} parent=1 // loop_exit
      _
    %752 = vsyncpa [#allocation4], 1
    %s753 = scalar_lea.sflag [#allocation4], 1
    %754 = vsyncpa %s753, 1

</llo_original>
